<compile_context>
chip_gen: v7x
topology: tpu7x:2x2x1
jax: 0.10.0
libtpu: 0.0.40
codegen_flags: <defaults>
</compile_context>

<pallas_src>
import jax
import jax.numpy as jnp
from jax import lax
from jax.experimental import pallas as pl
from jax.experimental.pallas import tpu as pltpu


def _mlp_kernel(x_ref, w1_ref, b1_ref, w2_ref, b2_ref, o_ref):
    # x_ref : (TILE_B, IN)  natural batch-major layout, streamed from HBM
    # w1_ref: (H, IN)       fc1 weight (PyTorch (out,in) layout), VMEM-resident
    # b1_ref: (H, 1)        fc1 bias (column -> broadcast along lanes)
    # w2_ref: (1, H)        fc2 weight, VMEM-resident
    # b2_ref: (1, 1)        fc2 bias, scalar in SMEM
    # o_ref : (1, TILE_B)   lane-dense output (batch on the lane axis)
    #
    # fc1 as A @ B^T (contract IN of both operands). Mosaic feeds the MXU from this
    # orientation; any small on-chip relayout rides the mostly-idle XLU and is hidden
    # under the x DMA. f32 accumulation.
    h = lax.dot_general(
        w1_ref[...], x_ref[...],
        dimension_numbers=(((1,), (1,)), ((), ())),
        preferred_element_type=jnp.float32,
    )                                                    # (H, TILE_B) f32
    h = jnp.maximum(h + b1_ref[...], 0.0)                # bias + ReLU (f32 VPU)

    z = jnp.dot(w2_ref[...], h, preferred_element_type=jnp.float32)   # (1, TILE_B)
    z = z + b2_ref[0, 0]

    # Numerically safe sigmoid: exponent argument is always <= 0 (no overflow for very
    # negative logits); exp + approximate reciprocal both run on the otherwise-idle EUP.
    e = jnp.exp(-jnp.abs(z))
    r = pl.reciprocal(1.0 + e, approx=True)
    o_ref[...] = jnp.where(z >= 0.0, r, e * r).astype(o_ref.dtype)


def mlp_forward(x, w1, b1, w2, b2, *, tile_b=8192, min_grid_steps=8):
    """Forward of MLP(input_size, hidden_size1).

    x : (B, IN)   w1: (H, IN)   b1: (H,)   w2: (1, H)   b2: (1,)   (nn.Linear layouts)
    returns (B, 1) == sigmoid(relu(x @ w1.T + b1) @ w2.T + b2)
    """
    B, IN = x.shape
    H = w1.shape[0]
    LANES = 128

    # ---- batch tile sizing (static Python ints) -----------------------------------
    # Batch lands on the 128-wide lane axis of the output, so the tile must be a
    # multiple of 128. Shrink for small batches; for large batches keep >= min_grid_steps
    # grid steps so megacore sharding (v7x) and double-buffering still overlap, without
    # collapsing the tile unnecessarily. VMEM use at tile_b=8192, IN=16, f32:
    # 2*(8192*16*4) + 2*(8192*4) + weights ~= 1.1 MiB -> well inside every generation's
    # scoped VMEM (so no vmem_limit_bytes override is needed).
    total_lanes = pl.cdiv(B, LANES)                       # 128-wide lane groups to cover B
    req_lanes = max(1, tile_b // LANES)
    lanes = min(req_lanes, total_lanes,
                max(pl.cdiv(total_lanes, min_grid_steps), min_grid_steps))
    lanes = max(lanes, 1)
    tile_b = LANES * lanes
    n_steps = pl.cdiv(B, tile_b)
    Bp = n_steps * tile_b                                 # lane-padded logical output width
    grid = (n_steps,)

    # No wrapper rewrite of x. Ragged final x block: the pipeline clips the DMA and the
    # stale rows only feed output lanes >= B, which are sliced off below (every batch
    # column is independent -- no cross-batch reduction in the kernel).
    b1_col = b1.reshape(H, 1).astype(jnp.float32)
    b2_sc = b2.reshape(1, 1).astype(jnp.float32)
    # NOTE: if precision allows, passing x / w1 / w2 already in bfloat16 halves the
    # dominant HBM stream; the kernel keeps f32 accumulation + f32 elementwise math
    # either way (safe on v5e, whose VPU/EUP have no bf16).

    itemsize = jnp.dtype(x.dtype).itemsize
    cost = pl.CostEstimate(
        flops=2 * B * IN * H + 2 * B * H,
        transcendentals=2 * B,
        bytes_accessed=(B * IN * itemsize                     # x stream (no rewrite)
                        + B * itemsize                        # output
                        + (H * IN + 2 * H + 1) * 4),          # resident weights/biases
    )

    out = pl.pallas_call(
        _mlp_kernel,
        out_shape=jax.ShapeDtypeStruct((1, Bp), x.dtype),
        grid=grid,
        in_specs=[
            # x: streamed per batch tile, auto double-buffered by the pipeline.
            pl.BlockSpec((tile_b, IN), lambda i: (i, 0)),
            # Weights / bias: full-array blocks, constant index_map -> VMEM-resident.
            pl.BlockSpec((H, IN), lambda i: (0, 0)),
            pl.BlockSpec((H, 1), lambda i: (0, 0)),
            pl.BlockSpec((1, H), lambda i: (0, 0)),
            # b2: scalar in SMEM (no VMEM tile / DMA for a (1,1) value).
            pl.BlockSpec(memory_space=pltpu.MemorySpace.SMEM),
        ],
        # Lane-dense (1, tile_b) output slab -> unmasked full-width vector stores.
        out_specs=pl.BlockSpec((1, tile_b), lambda i: (0, i)),
        compiler_params=pltpu.CompilerParams(
            dimension_semantics=("parallel",),   # batch tiles are independent
        ),
        cost_estimate=cost,
    )(x, w1, b1_col, w2, b2_sc)

    return out[0, :B].reshape(B, 1)


def init_mlp_params(key, input_size, hidden_size1, dtype=jnp.float32):
    """Deterministic init mimicking nn.Linear's U(-1/sqrt(fan_in), 1/sqrt(fan_in)),
    stored in PyTorch (out_features, in_features) layout."""
    k1, k2, k3, k4 = jax.random.split(key, 4)
    bound1 = 1.0 / (input_size ** 0.5)
    bound2 = 1.0 / (hidden_size1 ** 0.5)
    w1 = jax.random.uniform(k1, (hidden_size1, input_size), dtype, -bound1, bound1)
    b1 = jax.random.uniform(k2, (hidden_size1,), dtype, -bound1, bound1)
    w2 = jax.random.uniform(k3, (1, hidden_size1), dtype, -bound2, bound2)
    b2 = jax.random.uniform(k4, (1,), dtype, -bound2, bound2)
    return w1, b1, w2, b2


def _reference(x, w1, b1, w2, b2):
    return jax.nn.sigmoid(jnp.maximum(x @ w1.T + b1, 0.0) @ w2.T + b2)


if __name__ == "__main__":
    key = jax.random.PRNGKey(0)
    kx, kp, kx2 = jax.random.split(key, 3)

    batch = 8
    input_size = 16
    hidden_size1 = 32

    x = jax.random.normal(kx, (batch, input_size), dtype=jnp.float32)
    w1, b1, w2, b2 = init_mlp_params(kp, input_size, hidden_size1)

    out = jax.block_until_ready(mlp_forward(x, w1, b1, w2, b2))
    ref = _reference(x, w1, b1, w2, b2)
    assert out.shape == (batch, 1)
    assert jnp.allclose(out, ref, atol=1e-3, rtol=1e-3), float(jnp.max(jnp.abs(out - ref)))

    # Ragged batch, single enlarged tile (block bigger than the array -> masked edge DMA).
    x2 = jax.random.normal(kx2, (300, input_size), dtype=jnp.float32)
    out2 = jax.block_until_ready(mlp_forward(x2, w1, b1, w2, b2))
    ref2 = _reference(x2, w1, b1, w2, b2)
    assert out2.shape == (300, 1)
    assert jnp.allclose(out2, ref2, atol=1e-3, rtol=1e-3), float(jnp.max(jnp.abs(out2 - ref2)))

    # Same data, forced small tile -> multi-step grid (3 steps of 128) with a ragged
    # final block, exercising the pipelined / parallel path.
    out3 = jax.block_until_ready(mlp_forward(x2, w1, b1, w2, b2, tile_b=128))
    assert jnp.allclose(out3, ref2, atol=1e-3, rtol=1e-3), float(jnp.max(jnp.abs(out3 - ref2)))

    print("KERNEL_OK")
</pallas_src>

<mosaic_0001>
module attributes {stable_mosaic.version = 11 : i64} {
  func.func @_mlp_kernel(%arg0: i32, %arg1: memref<128x16xf32, #tpu.memory_space<vmem>>, %arg2: memref<32x16xf32, #tpu.memory_space<vmem>>, %arg3: memref<32x1xf32, #tpu.memory_space<vmem>>, %arg4: memref<1x32xf32, #tpu.memory_space<vmem>>, %arg5: memref<1x1xf32, #tpu.memory_space<smem>>, %arg6: memref<1x128xf32, #tpu.memory_space<vmem>>) attributes {dimension_semantics = [#tpu.dimension_semantics<parallel>], iteration_bounds = array<i64: 1>, scalar_prefetch = 0 : i64, scratch_operands = 0 : i64, tpu.core_type = #tpu.core_type<tc>, window_params = [{transform_indices = @transform_0, window_bounds = array<i64: 128, 16>}, {pipeline_mode = #tpu.pipeline_mode<synchronous>, transform_indices = @transform_1, window_bounds = array<i64: 32, 16>}, {pipeline_mode = #tpu.pipeline_mode<synchronous>, transform_indices = @transform_2, window_bounds = array<i64: 32, 1>}, {pipeline_mode = #tpu.pipeline_mode<synchronous>, transform_indices = @transform_3, window_bounds = array<i64: 1, 32>}, {transform_indices = @transform_4, window_bounds = array<i64: 1, 1>}, {transform_indices = @transform_5, window_bounds = array<i64: 1, 128>}]} {
    %c0 = arith.constant 0 : index
    %c0_0 = arith.constant 0 : index
    %0 = vector.load %arg2[%c0, %c0_0] : memref<32x16xf32, #tpu.memory_space<vmem>>, vector<32x16xf32>
    %c0_1 = arith.constant 0 : index
    %c0_2 = arith.constant 0 : index
    %1 = vector.load %arg1[%c0_1, %c0_2] : memref<128x16xf32, #tpu.memory_space<vmem>>, vector<128x16xf32>
    %cst = arith.constant dense<0.000000e+00> : vector<32x128xf32>
    %2 = tpu.matmul %0, %1, %cst {dimension_numbers = #tpu.dot_dimension_numbers<[1], [1], [0], [0], [0, 0, 1, 0], [], []>} : vector<32x16xf32>, vector<128x16xf32>, vector<32x128xf32> -> vector<32x128xf32>
    %c0_3 = arith.constant 0 : index
    %c0_4 = arith.constant 0 : index
    %3 = vector.load %arg3[%c0_3, %c0_4] : memref<32x1xf32, #tpu.memory_space<vmem>>, vector<32x1xf32>
    %4 = vector.broadcast %3 : vector<32x1xf32> to vector<32x128xf32>
    %5 = arith.addf %2, %4 : vector<32x128xf32>
    %cst_5 = arith.constant 0.000000e+00 : f32
    %6 = vector.broadcast %cst_5 : f32 to vector<32x128xf32>
    %7 = arith.maximumf %5, %6 : vector<32x128xf32>
    %c0_6 = arith.constant 0 : index
    %c0_7 = arith.constant 0 : index
    %8 = vector.load %arg4[%c0_6, %c0_7] : memref<1x32xf32, #tpu.memory_space<vmem>>, vector<1x32xf32>
    %cst_8 = arith.constant dense<0.000000e+00> : vector<1x128xf32>
    %9 = tpu.matmul %8, %7, %cst_8 {dimension_numbers = #tpu.dot_dimension_numbers<[1], [0], [0], [1], [0, 0, 1, 1], [], []>} : vector<1x32xf32>, vector<32x128xf32>, vector<1x128xf32> -> vector<1x128xf32>
    %c0_9 = arith.constant 0 : index
    %c0_10 = arith.constant 0 : index
    %10 = memref.load %arg5[%c0_9, %c0_10] : memref<1x1xf32, #tpu.memory_space<smem>>
    %11 = vector.broadcast %10 : f32 to vector<1x128xf32>
    %12 = arith.addf %9, %11 : vector<1x128xf32>
    %13 = math.absf %12 : vector<1x128xf32>
    %cst_11 = arith.constant 0.000000e+00 : f32
    %14 = vector.broadcast %cst_11 : f32 to vector<1x128xf32>
    %15 = arith.subf %14, %13 : vector<1x128xf32>
    %16 = math.exp %15 : vector<1x128xf32>
    %cst_12 = arith.constant 1.000000e+00 : f32
    %17 = vector.broadcast %cst_12 : f32 to vector<1x128xf32>
    %18 = arith.addf %17, %16 : vector<1x128xf32>
    %19 = tpu.reciprocal %18 {approx = true} : vector<1x128xf32> -> vector<1x128xf32>
    %cst_13 = arith.constant 0.000000e+00 : f32
    %20 = vector.broadcast %cst_13 : f32 to vector<1x128xf32>
    %21 = arith.cmpf oge, %12, %20 : vector<1x128xf32>
    %22 = arith.mulf %16, %19 : vector<1x128xf32>
    %23 = arith.select %21, %19, %22 : vector<1x128xi1>, vector<1x128xf32>
    %c0_14 = arith.constant 0 : index
    %c0_15 = arith.constant 0 : index
    %24 = vector.load %arg6[%c0_14, %c0_15] : memref<1x128xf32, #tpu.memory_space<vmem>>, vector<1x128xf32>
    tpu.vector_store %arg6[%c0_14, %c0_15], %23 {strides = array<i32>} : memref<1x128xf32, #tpu.memory_space<vmem>>, vector<1x128xf32>,
    return
  }
  func.func @transform_0(%arg0: i32) -> (i32, i32) {
    %c0_i32 = arith.constant 0 : i32
    %c0_i32_0 = arith.constant 0 : i32
    return %arg0, %c0_i32 : i32, i32
  }
  func.func @transform_1(%arg0: i32) -> (i32, i32) {
    %c0_i32 = arith.constant 0 : i32
    %c0_i32_0 = arith.constant 0 : i32
    %c0_i32_1 = arith.constant 0 : i32
    return %c0_i32, %c0_i32_0 : i32, i32
  }
  func.func @transform_2(%arg0: i32) -> (i32, i32) {
    %c0_i32 = arith.constant 0 : i32
    %c0_i32_0 = arith.constant 0 : i32
    %c0_i32_1 = arith.constant 0 : i32
    return %c0_i32, %c0_i32_0 : i32, i32
  }
  func.func @transform_3(%arg0: i32) -> (i32, i32) {
    %c0_i32 = arith.constant 0 : i32
    %c0_i32_0 = arith.constant 0 : i32
    %c0_i32_1 = arith.constant 0 : i32
    return %c0_i32, %c0_i32_0 : i32, i32
  }
  func.func @transform_4(%arg0: i32) -> (i32, i32) {
    %c0_i32 = arith.constant 0 : i32
    %c0_i32_0 = arith.constant 0 : i32
    %c0_i32_1 = arith.constant 0 : i32
    return %c0_i32, %c0_i32_0 : i32, i32
  }
  func.func @transform_5(%arg0: i32) -> (i32, i32) {
    %c0_i32 = arith.constant 0 : i32
    %c0_i32_0 = arith.constant 0 : i32
    return %c0_i32, %arg0 : i32, i32
  }
}

</mosaic_0001>

<llo_original>
// kernel: tpu_custom_call.1
$region0: #{tpu_custom_call.1}
  #allocation0 [shape = 'u32[]', space=smem, size = 0x4, offset = 0x4, fixed_abs, tag = 'smem constant byte address 0x4 - core index']
  #allocation1 [shape = 'u32[144,128]{1,0:T(1,128)}', space=vmem, size = 0x12000, scoped, tag = 'internal scratch']
  #allocation2 [shape = 'f32[1,1]{1,0:T(1,128)S(6)}', space=smem, size = 0x200, scoped, tag = 'scoped memory for tpu_custom_call.1']
  %s0 = inlined_call_operand.vmem [shape: f32[8,16], index: 0, kind: input, shape index: {}]
  %s1 = inlined_call_operand.vmem [shape: f32[32,16], index: 1, kind: input, shape index: {}]
  %s2 = inlined_call_operand.vmem [shape: f32[32,1], index: 2, kind: input, shape index: {}]
  %s3 = inlined_call_operand.vmem [shape: f32[1,32], index: 3, kind: input, shape index: {}]
  %s4 = inlined_call_operand.<no memory space> [shape: f32[1,1], index: 4, kind: input, shape index: {}]
  %s5 = inlined_call_operand.hbm [shape: f32[1,128], index: 5, kind: output, shape index: {}]
  %s6 = sld [smem:[#allocation0]]
  $region30: #{tpu_custom_call.1} parent=0
    _
  %s8 = ssub.s32 1, %s6
  %s9 = scalar_select 0, %s8, %s6
  %10 = sst [smem:[#allocation2]] %s4
  $region1: #{tpu_custom_call.1} parent=0
    #allocation3 [shape = 'u8[512]{0}', space=vmem, size = 0x400, scoped, tag = 'output window, operand 0, single buffered']
    #allocation4 [shape = 's32[1]{0}', space=sflag, size = 0x4, scoped, tag = 'scoped memory for tpu_custom_call.1']
    %11 = vsyncpa [#allocation4], 0
    // Predicated region
    $region2: #{tpu_custom_call.1} parent=1 // pred_check
      _
    $region3: #{tpu_custom_call.1} parent=1 // pred_check_branch
      %13 = sbr.rel (0) target = $region5
    $region4: #{tpu_custom_call.1} parent=1 // pred_region
      _
    $region5: #{tpu_custom_call.1} parent=1 // pred_fallthru
      _
    // Predicated region
    $region6: #{tpu_custom_call.1} parent=1 // pred_check
      _
    $region7: #{tpu_custom_call.1} parent=1 // pred_check_branch
      %15 = sbr.rel (0) target = $region9
    $region8: #{tpu_custom_call.1} parent=1 // pred_region
      _
    $region9: #{tpu_custom_call.1} parent=1 // pred_fallthru
      _
    // Predicated region
    $region10: #{tpu_custom_call.1} parent=1 // pred_check
      _
    $region11: #{tpu_custom_call.1} parent=1 // pred_check_branch
      %17 = sbr.rel (0) target = $region13
    $region12: #{tpu_custom_call.1} parent=1 // pred_region
      _
    $region13: #{tpu_custom_call.1} parent=1 // pred_fallthru
      _
    // Predicated region
    $region14: #{tpu_custom_call.1} parent=1 // pred_check
      _
    $region15: #{tpu_custom_call.1} parent=1 // pred_check_branch
      %19 = sbr.rel (0) target = $region17
    $region16: #{tpu_custom_call.1} parent=1 // pred_region
      _
    $region17: #{tpu_custom_call.1} parent=1 // pred_fallthru
      _
    // Predicated region
    $region18: #{tpu_custom_call.1} parent=1 // pred_check
      _
    $region19: #{tpu_custom_call.1} parent=1 // pred_check_branch
      %21 = sbr.rel (0) target = $region21
    $region20: #{tpu_custom_call.1} parent=1 // pred_region
      _
    $region21: #{tpu_custom_call.1} parent=1 // pred_fallthru
      _
    %v22 = vld [vmem:[%s1] sm:$0xff]
    %v23 = vld [vmem:[%s1 + $0x8] sm:$0xff]
    %v24 = vld [vmem:[%s1 + $0x10] sm:$0xff]
    %v25 = vld [vmem:[%s1 + $0x18] sm:$0xff]
    %v26 = vld [vmem:[%s0] sm:$0xff]
    %v27 = vld [vmem:[%s0 + $0x8] sm:$0xff]
    %v28 = vld [vmem:[%s0 + $0x10] sm:$0xff]
    %v29 = vld [vmem:[%s0 + $0x18] sm:$0xff]
    %v30 = vld [vmem:[%s0 + $0x20] sm:$0xff]
    %v31 = vld [vmem:[%s0 + $0x28] sm:$0xff]
    %v32 = vld [vmem:[%s0 + $0x30] sm:$0xff]
    %v33 = vld [vmem:[%s0 + $0x38] sm:$0xff]
    %v34 = vld [vmem:[%s0 + $0x40] sm:$0xff]
    %v35 = vld [vmem:[%s0 + $0x48] sm:$0xff]
    %v36 = vld [vmem:[%s0 + $0x50] sm:$0xff]
    %v37 = vld [vmem:[%s0 + $0x58] sm:$0xff]
    %v38 = vld [vmem:[%s0 + $0x60] sm:$0xff]
    %v39 = vld [vmem:[%s0 + $0x68] sm:$0xff]
    %v40 = vld [vmem:[%s0 + $0x70] sm:$0xff]
    %v41 = vld [vmem:[%s0 + $0x78] sm:$0xff]
    %v42 = vld [vmem:[%s2] sm:$0xff]
    %v43 = vld [vmem:[%s2 + $0x8] sm:$0xff]
    %v44 = vld [vmem:[%s2 + $0x10] sm:$0xff]
    %v45 = vld [vmem:[%s2 + $0x18] sm:$0xff]
    %47 = vset.pattern.permute.xlu0 0
    %48 = vperm.xlu0 %47, %v42
    %v49 = vpop.permute.xlu0 %48
    %52 = vset.pattern.permute.xlu0 0
    %53 = vperm.xlu0 %52, %v43
    %v54 = vpop.permute.xlu0 %53
    %57 = vset.pattern.permute.xlu0 0
    %58 = vperm.xlu0 %57, %v44
    %v59 = vpop.permute.xlu0 %58
    %62 = vset.pattern.permute.xlu0 0
    %63 = vperm.xlu0 %62, %v45
    %v64 = vpop.permute.xlu0 %63
    %vm66 = vcmask 130048
    %v68 = vsel %vm66, %v22, 0
    %v71 = vsel %vm66, %v23, 0
    %v74 = vsel %vm66, %v24, 0
    %v77 = vsel %vm66, %v25, 0
    %v80 = vsel %vm66, %v26, 0
    %v83 = vsel %vm66, %v27, 0
    %v86 = vsel %vm66, %v28, 0
    %v89 = vsel %vm66, %v29, 0
    %v92 = vsel %vm66, %v30, 0
    %v95 = vsel %vm66, %v31, 0
    %v98 = vsel %vm66, %v32, 0
    %v101 = vsel %vm66, %v33, 0
    %v104 = vsel %vm66, %v34, 0
    %v107 = vsel %vm66, %v35, 0
    %v110 = vsel %vm66, %v36, 0
    %v113 = vsel %vm66, %v37, 0
    %v116 = vsel %vm66, %v38, 0
    %v119 = vsel %vm66, %v39, 0
    %v122 = vsel %vm66, %v40, 0
    %v125 = vsel %vm66, %v41, 0
    %127 = vmatprep.subr.mxu0 0.0
    %128 = vmatpush1.xpose.msra.mxu0 %v80
    %129 = vmatprep.subr.mxu0 0.0
    %130 = vmatpush1.xpose.msra.mxu0 %v83
    %131 = vmatprep.subr.mxu0 0.0
    %132 = vmatpush1.xpose.msra.mxu0 %v86
    %133 = vmatprep.subr.mxu0 0.0
    %134 = vmatpush1.xpose.msra.mxu0 %v89
    %135 = vmatprep.subr.mxu0 0.0
    %136 = vmatpush1.xpose.msra.mxu0 %v92
    %137 = vmatprep.subr.mxu0 0.0
    %138 = vmatpush1.xpose.msra.mxu0 %v95
    %139 = vmatprep.subr.mxu0 0.0
    %140 = vmatpush1.xpose.msra.mxu0 %v98
    %141 = vmatprep.subr.mxu0 0.0
    %142 = vmatpush1.xpose.msra.mxu0 %v101
    %143 = vmatprep.subr.mxu0 0.0
    %144 = vmatpush1.xpose.msra.mxu0 %v104
    %145 = vmatprep.subr.mxu0 0.0
    %146 = vmatpush1.xpose.msra.mxu0 %v107
    %147 = vmatprep.subr.mxu0 0.0
    %148 = vmatpush1.xpose.msra.mxu0 %v110
    %149 = vmatprep.subr.mxu0 0.0
    %150 = vmatpush1.xpose.msra.mxu0 %v113
    %151 = vmatprep.subr.mxu0 0.0
    %152 = vmatpush1.xpose.msra.mxu0 %v116
    %153 = vmatprep.subr.mxu0 0.0
    %154 = vmatpush1.xpose.msra.mxu0 %v119
    %155 = vmatprep.subr.mxu0 0.0
    %156 = vmatpush1.xpose.msra.mxu0 %v122
    %157 = vmatprep.subr.mxu0 0.0
    %158 = vmatpush1.xpose.msra.mxu0 %v125
    %159 = vmatprep.subr.mxu0 0.0
    %160 = vmatpush1.xpose.msra.mxu0 0.0
    %161 = vmatprep.subr.mxu0 0.0
    %162 = vmatpush1.xpose.msra.mxu0 0.0
    %163 = vmatprep.subr.mxu0 0.0
    %164 = vmatpush1.xpose.msra.mxu0 0.0
    %165 = vmatprep.subr.mxu0 0.0
    %166 = vmatpush1.xpose.msra.mxu0 0.0
    %167 = vmatprep.subr.mxu0 0.0
    %168 = vmatpush1.xpose.msra.mxu0 0.0
    %169 = vmatprep.subr.mxu0 0.0
    %170 = vmatpush1.xpose.msra.mxu0 0.0
    %171 = vmatprep.subr.mxu0 0.0
    %172 = vmatpush1.xpose.msra.mxu0 0.0
    %173 = vmatprep.subr.mxu0 0.0
    %174 = vmatpush1.xpose.msra.mxu0 0.0
    %175 = vmatprep.subr.mxu0 0.0
    %176 = vmatpush1.xpose.msra.mxu0 0.0
    %177 = vmatprep.subr.mxu0 0.0
    %178 = vmatpush1.xpose.msra.mxu0 0.0
    %179 = vmatprep.subr.mxu0 0.0
    %180 = vmatpush1.xpose.msra.mxu0 0.0
    %181 = vmatprep.subr.mxu0 0.0
    %182 = vmatpush1.xpose.msra.mxu0 0.0
    %183 = vmatprep.subr.mxu0 0.0
    %184 = vmatpush1.xpose.msra.mxu0 0.0
    %185 = vmatprep.subr.mxu0 0.0
    %186 = vmatpush1.xpose.msra.mxu0 0.0
    %187 = vmatprep.subr.mxu0 0.0
    %188 = vmatpush1.xpose.msra.mxu0 0.0
    %189 = vmatprep.subr.mxu0 0.0
    %190 = vmatpush1.xpose.msra.mxu0 0.0
    %191 = vmatprep.mubr.f32.mxu0 0.0
    %192 = vmatmul.mubr.f32.gmra.mrb[0].mxu0 %v68
    %v193 = vpop.f32.mrb[0].mxu0
    %v194 = vadd.f32 %v49, %v193
    %v195 = vpop.f32.mrb[0].mxu0
    %196 = vmatprep.mubr.f32.mxu0 0.0
    %197 = vmatmul.mubr.f32.gmra.mrb[0].mxu0 %v71
    %v198 = vpop.f32.mrb[0].mxu0
    %v199 = vadd.f32 %v54, %v198
    %v200 = vpop.f32.mrb[0].mxu0
    %201 = vmatprep.mubr.f32.mxu0 0.0
    %202 = vmatmul.mubr.f32.gmra.mrb[0].mxu0 %v74
    %v203 = vpop.f32.mrb[0].mxu0
    %v204 = vadd.f32 %v59, %v203
    %v205 = vpop.f32.mrb[0].mxu0
    %206 = vmatprep.mubr.f32.mxu0 0.0
    %207 = vmatmul.mubr.f32.gmra.mrb[0].mxu0 %v77
    %v208 = vpop.f32.mrb[0].mxu0
    %v209 = vadd.f32 %v64, %v208
    %v210 = vpop.f32.mrb[0].mxu0
    %211 = vdwg.mxu0
    %v212 = vmax.f32 %v194, 0.0
    %v213 = vmax.f32 %v199, 0.0
    %v214 = vmax.f32 %v204, 0.0
    %v215 = vmax.f32 %v209, 0.0
    %v216 = vld [vmem:[%s3] sm:$0x1]
    %s217 = sld [smem:[#allocation2]]
    %v218 = vstv %s217
    %vm219 = vcmask 261120
    %v221 = vsel %vm219, %v216, 0
    %223 = vmatprep.subr.mxu0 0.0
    %224 = vmatpush1.msra.mxu0 %v212
    %225 = vmatprep.subr.mxu0 0.0
    %226 = vmatpush1.msra.mxu0 %v213
    %227 = vmatprep.subr.mxu0 0.0
    %228 = vmatpush1.msra.mxu0 %v214
    %229 = vmatprep.subr.mxu0 0.0
    %230 = vmatpush1.msra.mxu0 %v215
    %231 = vmatprep.subr.mxu0 0.0
    %232 = vmatpush1.msra.mxu0 0.0
    %233 = vmatprep.subr.mxu0 0.0
    %234 = vmatpush1.msra.mxu0 0.0
    %235 = vmatprep.subr.mxu0 0.0
    %236 = vmatpush1.msra.mxu0 0.0
    %237 = vmatprep.subr.mxu0 0.0
    %238 = vmatpush1.msra.mxu0 0.0
    %239 = vmatprep.subr.mxu0 0.0
    %240 = vmatpush1.msra.mxu0 0.0
    %241 = vmatprep.subr.mxu0 0.0
    %242 = vmatpush1.msra.mxu0 0.0
    %243 = vmatprep.subr.mxu0 0.0
    %244 = vmatpush1.msra.mxu0 0.0
    %245 = vmatprep.subr.mxu0 0.0
    %246 = vmatpush1.msra.mxu0 0.0
    %247 = vmatprep.subr.mxu0 0.0
    %248 = vmatpush1.msra.mxu0 0.0
    %249 = vmatprep.subr.mxu0 0.0
    %250 = vmatpush1.msra.mxu0 0.0
    %251 = vmatprep.subr.mxu0 0.0
    %252 = vmatpush1.msra.mxu0 0.0
    %253 = vmatprep.subr.mxu0 0.0
    %254 = vmatpush1.msra.mxu0 0.0
    %255 = vmatprep.subr.mxu0 0.0
    %256 = vmatpush1.msra.mxu0 0.0
    %257 = vmatprep.subr.mxu0 0.0
    %258 = vmatpush1.msra.mxu0 0.0
    %259 = vmatprep.subr.mxu0 0.0
    %260 = vmatpush1.msra.mxu0 0.0
    %261 = vmatprep.subr.mxu0 0.0
    %262 = vmatpush1.msra.mxu0 0.0
    %263 = vmatprep.subr.mxu0 0.0
    %264 = vmatpush1.msra.mxu0 0.0
    %265 = vmatprep.subr.mxu0 0.0
    %266 = vmatpush1.msra.mxu0 0.0
    %267 = vmatprep.subr.mxu0 0.0
    %268 = vmatpush1.msra.mxu0 0.0
    %269 = vmatprep.subr.mxu0 0.0
    %270 = vmatpush1.msra.mxu0 0.0
    %271 = vmatprep.subr.mxu0 0.0
    %272 = vmatpush1.msra.mxu0 0.0
    %273 = vmatprep.subr.mxu0 0.0
    %274 = vmatpush1.msra.mxu0 0.0
    %275 = vmatprep.subr.mxu0 0.0
    %276 = vmatpush1.msra.mxu0 0.0
    %277 = vmatprep.subr.mxu0 0.0
    %278 = vmatpush1.msra.mxu0 0.0
    %279 = vmatprep.subr.mxu0 0.0
    %280 = vmatpush1.msra.mxu0 0.0
    %281 = vmatprep.subr.mxu0 0.0
    %282 = vmatpush1.msra.mxu0 0.0
    %283 = vmatprep.subr.mxu0 0.0
    %284 = vmatpush1.msra.mxu0 0.0
    %285 = vmatprep.subr.mxu0 0.0
    %286 = vmatpush1.msra.mxu0 0.0
    %287 = vmatprep.mubr.f32.mxu0 0.0
    %288 = vmatmul.mubr.f32.gmra.mrb[0].mxu0 %v221
    %v289 = vpop.f32.mrb[0].mxu0
    %v290 = vadd.f32 %v218, %v289
    %v291 = vpop.f32.mrb[0].mxu0
    %292 = vdwg.mxu0
    %v293 = vand.u32 2147483647, %v290
    %v294 = vsub.f32 0.0, %v293
    %v295 = vmul.f32 %v294, 1.442695
    %v296 = vpow.pop %v295
    %v297 = vadd.f32 %v296, 1.0
    %v298 = vrcp.pop %v297
    %vm299 = vcmp.ge.f32.partialorder %v290, 0.0
    %v300 = vmul.f32 %v296, %v298
    %v301 = vsel %vm299, %v298, %v300
    %302 = vst [vmem:[#allocation3] sm:$0x1] %v301
    // Predicated region
    $region22: #{tpu_custom_call.1} parent=1 // pred_check
      _
    $region23: #{tpu_custom_call.1} parent=1 // pred_check_branch
      %304 = sbr.rel (0) target = $region25
    $region24: #{tpu_custom_call.1} parent=1 // pred_region
      %s306 = ssub.s32 16, 16
      %307 = vsyncadd [#allocation4], %s306
      %s309 = sshll.u32 [#allocation3], 4
      %s310 = int_to_ptr.vmem [resolvable:$true] %s309
      %312 = dma.vmem_to_hbm [thread:$0]  %s310, 16, %s5, [#allocation4]
    $region25: #{tpu_custom_call.1} parent=1 // pred_fallthru
      _
    // Predicated region
    $region26: #{tpu_custom_call.1} parent=1 // pred_check
      _
    $region27: #{tpu_custom_call.1} parent=1 // pred_check_branch
      %314 = sbr.rel (0) target = $region29
    $region28: #{tpu_custom_call.1} parent=1 // pred_region
      %315 = dma.done [#allocation4], 16
    $region29: #{tpu_custom_call.1} parent=1 // pred_fallthru
      _
    %316 = vsyncpa [#allocation4], 1

</llo_original>
